<compile_context>
chip_gen: v6e
topology: v6e:2x2x1
jax: 0.10.0
libtpu: 0.0.40
codegen_flags: <defaults>
</compile_context>

<pallas_src>
from typing import Dict

import jax
import jax.numpy as jnp
from jax.experimental import pallas as pl
from jax.experimental.pallas import tpu as pltpu


def _round_up(x: int, m: int) -> int:
    return (x + m - 1) // m * m


# ----------------------------------------------------------------------------
# Pallas kernels (the wrapped RF Linear's forward)
# ----------------------------------------------------------------------------
def _linear_wres_kernel(x_ref, w_ref, b_ref, o_ref):
    # weight-resident path: x_ref [tm, K], w_ref [K, N], b_ref [1, N] -> o_ref [tm, N]
    acc = jnp.dot(x_ref[...], w_ref[...], preferred_element_type=jnp.float32)
    o_ref[...] = (acc + b_ref[...].astype(jnp.float32)).astype(o_ref.dtype)


def _linear_tiled_kernel(x_ref, w_ref, b_ref, o_ref, acc_ref):
    # tiled path: x_ref [tm, tk], w_ref [tk, tn], b_ref [1, tn], acc_ref [tm, tn] f32
    k = pl.program_id(2)

    @pl.when(k == 0)
    def _init():
        acc_ref[...] = jnp.zeros_like(acc_ref)

    acc_ref[...] += jnp.dot(x_ref[...], w_ref[...], preferred_element_type=jnp.float32)

    @pl.when(k == pl.num_programs(2) - 1)
    def _finalize():
        o_ref[...] = (acc_ref[...] + b_ref[...].astype(jnp.float32)).astype(o_ref.dtype)


def pallas_linear(
    x2d: jax.Array,
    w: jax.Array,
    b: jax.Array,
    *,
    tm: int = 256,
    tn: int = 256,
    tk: int = 512,
    weight_resident_bytes: int = 4 << 20,
    force_tiled: bool = False,
) -> jax.Array:
    """y = x2d @ w + b as a tiled, pipelined Pallas TPU kernel.

    Inputs are padded up to (8, 128)-aligned tile multiples and the result is
    sliced back, so arbitrary [batch*seq, in_dim] x [in_dim, out_dim] shapes
    are handled correctly.  Default tile volumes (256/256/512, f32) keep the
    double-buffered working set well under the scoped-VMEM default on every
    generation (v5e/v6e 32 MiB of 128 MiB physical, v7x 32 MiB of 64 MiB).
    """
    M, K = x2d.shape
    K2, N = w.shape
    assert K == K2 and b.shape == (1, N)
    out_dtype = x2d.dtype

    # Tile sizes clamped to the (8,128)-rounded problem dims.
    tm_eff = min(tm, _round_up(M, 8))
    tk_eff = min(tk, _round_up(K, 128))
    tn_eff = min(tn, _round_up(N, 128))
    Mp = _round_up(M, tm_eff)
    Kp = _round_up(K, tk_eff)
    Np = _round_up(N, tn_eff)

    xp = x2d if (Mp, Kp) == (M, K) else jnp.pad(x2d, ((0, Mp - M), (0, Kp - K)))
    wp = w if (Kp, Np) == (K, N) else jnp.pad(w, ((0, Kp - K), (0, Np - N)))
    bp = b if Np == N else jnp.pad(b, ((0, 0), (0, Np - N)))

    in_bytes = jnp.dtype(x2d.dtype).itemsize
    out_bytes = jnp.dtype(out_dtype).itemsize
    cost = pl.CostEstimate(
        flops=2 * Mp * Np * Kp,
        transcendentals=0,
        bytes_accessed=(Mp * Kp + Kp * Np + Np) * in_bytes + Mp * Np * out_bytes,
    )

    use_weight_resident = (not force_tiled) and (Kp * Np * in_bytes <= weight_resident_bytes)

    if use_weight_resident:
        # Weight + bias fetched once (constant index_map -> no re-DMA across M
        # steps); only the activation / output tiles stream over M.
        out = pl.pallas_call(
            _linear_wres_kernel,
            out_shape=jax.ShapeDtypeStruct((Mp, Np), out_dtype),
            grid_spec=pltpu.PrefetchScalarGridSpec(
                num_scalar_prefetch=0,
                grid=(Mp // tm_eff,),
                in_specs=[
                    pl.BlockSpec((tm_eff, Kp), lambda i: (i, 0)),
                    pl.BlockSpec((Kp, Np), lambda i: (0, 0)),
                    pl.BlockSpec((1, Np), lambda i: (0, 0)),
                ],
                out_specs=pl.BlockSpec((tm_eff, Np), lambda i: (i, 0)),
            ),
            compiler_params=pltpu.CompilerParams(
                dimension_semantics=("parallel",),
            ),
            cost_estimate=cost,
        )(xp, wp, bp)
    else:
        # General (M, N, K)-tiled path with f32 VMEM accumulator, K innermost.
        out = pl.pallas_call(
            _linear_tiled_kernel,
            out_shape=jax.ShapeDtypeStruct((Mp, Np), out_dtype),
            grid_spec=pltpu.PrefetchScalarGridSpec(
                num_scalar_prefetch=0,
                grid=(Mp // tm_eff, Np // tn_eff, Kp // tk_eff),
                in_specs=[
                    pl.BlockSpec((tm_eff, tk_eff), lambda i, j, k: (i, k)),
                    pl.BlockSpec((tk_eff, tn_eff), lambda i, j, k: (k, j)),
                    pl.BlockSpec((1, tn_eff), lambda i, j, k: (0, j)),
                ],
                # output index_map independent of k -> the output tile stays
                # VMEM-resident across the whole reduction.
                out_specs=pl.BlockSpec((tm_eff, tn_eff), lambda i, j, k: (i, j)),
                scratch_shapes=[pltpu.VMEM((tm_eff, tn_eff), jnp.float32)],
            ),
            compiler_params=pltpu.CompilerParams(
                dimension_semantics=("parallel", "parallel", "arbitrary"),
            ),
            cost_estimate=cost,
        )(xp, wp, bp)

    if (Mp, Np) != (M, N):
        out = out[:M, :N]
    return out


# ----------------------------------------------------------------------------
# Bridge-equivalent wrapper: mirrors _RFModuleAsPTModule's semantics
# ----------------------------------------------------------------------------
class RFLinearModule:
    """Stand-in for the wrapped rf.Module (an rf.Linear): y = x @ W + b."""

    def __init__(self, in_dim: int, out_dim: int, key: jax.Array, dtype=jnp.float32):
        kw, kb = jax.random.split(key)
        scale = 1.0 / jnp.sqrt(jnp.float32(in_dim))
        self.weight = (jax.random.normal(kw, (in_dim, out_dim), jnp.float32) * scale).astype(dtype)
        self.bias = (jax.random.normal(kb, (1, out_dim), jnp.float32) * 0.01).astype(dtype)
        # an "auxiliary" parameter, analogous to an RF aux param (e.g. a running stat)
        self.aux_step = jnp.zeros((), jnp.float32)

    def named_parameters(self) -> Dict[str, jax.Array]:
        return {"weight": self.weight, "bias": self.bias}

    def named_aux_parameters(self) -> Dict[str, jax.Array]:
        return {"aux_step": self.aux_step}

    def __call__(self, x: jax.Array) -> jax.Array:
        b, s, k = x.shape
        y2d = pallas_linear(x.reshape(b * s, k), self.weight, self.bias)
        return y2d.reshape(b, s, self.weight.shape[1])


class RFModuleAsPallasModule:
    """Pallas/JAX analogue of `_RFModuleAsPTModule`.

    Re-exposes the wrapped module's parameters (aux params kept as "buffers",
    i.e. non-trainable entries) and delegates forward exactly.
    """

    def __init__(self, rf_module: RFLinearModule, *, aux_params_as_buffers: bool = True):
        self._rf_module = rf_module
        self._aux_params_as_buffers = aux_params_as_buffers
        self.params: Dict[str, jax.Array] = {}
        self.buffers: Dict[str, jax.Array] = {}
        for name, p in rf_module.named_parameters().items():
            self.params[name] = p
        for name, p in rf_module.named_aux_parameters().items():
            if aux_params_as_buffers:
                self.buffers[name] = p
            else:
                self.params[name] = p
        # TODO(synk): the PyTorch `_apply` hook (device/dtype moves syncing raw
        # tensors back into the RF params) has no Pallas equivalent; parameter
        # placement is handled by JAX itself.

    @property
    def rf_module(self) -> RFLinearModule:
        return self._rf_module

    def __call__(self, *args, **kwargs):
        # forward: pure delegation, identical to _RFModuleAsPTModule.forward
        return self._rf_module(*args, **kwargs)


# ----------------------------------------------------------------------------
if __name__ == "__main__":
    key = jax.random.PRNGKey(0)
    k_param, k_x, k_x2, k_p2 = jax.random.split(key, 4)

    # --- case 1: lane-aligned RF Linear through the bridge wrapper ----------
    # (weight-resident fast path: full [K, N] weight fetched once, x/y stream)
    batch, seq, in_dim, out_dim = 2, 8, 128, 128
    rf_mod = RFLinearModule(in_dim, out_dim, k_param)
    pt_like_mod = RFModuleAsPallasModule(rf_mod, aux_params_as_buffers=True)

    x = jax.random.normal(k_x, (batch, seq, in_dim), jnp.float32)
    y = jax.block_until_ready(pt_like_mod(x))

    y_ref = (x.reshape(-1, in_dim) @ rf_mod.weight + rf_mod.bias).reshape(batch, seq, out_dim)
    assert y.shape == (batch, seq, out_dim)
    assert jnp.allclose(y, y_ref, atol=1e-4, rtol=1e-5), "case 1 mismatch"

    # --- case 2: exercise the general tiled path (padding + multi-step K) ---
    M2, K2, N2 = 80, 384, 160  # deliberately not (8,128)-tile multiples on M/N
    kw2, kb2 = jax.random.split(k_p2)
    x2 = jax.random.normal(k_x2, (M2, K2), jnp.float32)
    w2 = jax.random.normal(kw2, (K2, N2), jnp.float32) * (1.0 / jnp.sqrt(jnp.float32(K2)))
    b2 = jax.random.normal(kb2, (1, N2), jnp.float32) * 0.01
    y2 = jax.block_until_ready(
        pallas_linear(x2, w2, b2, tm=64, tn=128, tk=128, force_tiled=True)
    )
    y2_ref = x2 @ w2 + b2
    assert y2.shape == (M2, N2)
    assert jnp.allclose(y2, y2_ref, atol=1e-4, rtol=1e-5), "case 2 mismatch"

    # --- case 3: bf16 params/activations, f32 MXU accumulation --------------
    rf_mod_bf16 = RFLinearModule(in_dim, out_dim, k_param, dtype=jnp.bfloat16)
    pt_like_bf16 = RFModuleAsPallasModule(rf_mod_bf16)
    x_bf16 = x.astype(jnp.bfloat16)
    y_bf16 = jax.block_until_ready(pt_like_bf16(x_bf16))
    y_bf16_ref = (
        x_bf16.reshape(-1, in_dim).astype(jnp.float32) @ rf_mod_bf16.weight.astype(jnp.float32)
        + rf_mod_bf16.bias.astype(jnp.float32)
    ).reshape(batch, seq, out_dim)
    assert y_bf16.dtype == jnp.bfloat16
    assert jnp.allclose(y_bf16.astype(jnp.float32), y_bf16_ref, atol=5e-2, rtol=5e-2), "case 3 mismatch"

    print("KERNEL_OK")
</pallas_src>

<mosaic_0001>
module attributes {stable_mosaic.version = 11 : i64} {
  func.func @_linear_wres_kernel(%arg0: i32, %arg1: memref<16x128xf32, #tpu.memory_space<vmem>>, %arg2: memref<128x128xf32, #tpu.memory_space<vmem>>, %arg3: memref<1x128xf32, #tpu.memory_space<vmem>>, %arg4: memref<16x128xf32, #tpu.memory_space<vmem>>) attributes {dimension_semantics = [#tpu.dimension_semantics<parallel>], iteration_bounds = array<i64: 1>, scalar_prefetch = 0 : i64, scratch_operands = 0 : i64, tpu.core_type = #tpu.core_type<tc>, window_params = [{transform_indices = @transform_0, window_bounds = array<i64: 16, 128>}, {pipeline_mode = #tpu.pipeline_mode<synchronous>, transform_indices = @transform_1, window_bounds = array<i64: 128, 128>}, {pipeline_mode = #tpu.pipeline_mode<synchronous>, transform_indices = @transform_2, window_bounds = array<i64: 1, 128>}, {transform_indices = @transform_3, window_bounds = array<i64: 16, 128>}]} {
    %c0 = arith.constant 0 : index
    %c0_0 = arith.constant 0 : index
    %0 = vector.load %arg1[%c0, %c0_0] : memref<16x128xf32, #tpu.memory_space<vmem>>, vector<16x128xf32>
    %c0_1 = arith.constant 0 : index
    %c0_2 = arith.constant 0 : index
    %1 = vector.load %arg2[%c0_1, %c0_2] : memref<128x128xf32, #tpu.memory_space<vmem>>, vector<128x128xf32>
    %cst = arith.constant dense<0.000000e+00> : vector<16x128xf32>
    %2 = tpu.matmul %0, %1, %cst {dimension_numbers = #tpu.dot_dimension_numbers<[1], [0], [0], [1], [0, 0, 1, 1], [], []>} : vector<16x128xf32>, vector<128x128xf32>, vector<16x128xf32> -> vector<16x128xf32>
    %c0_3 = arith.constant 0 : index
    %c0_4 = arith.constant 0 : index
    %3 = vector.load %arg3[%c0_3, %c0_4] : memref<1x128xf32, #tpu.memory_space<vmem>>, vector<1x128xf32>
    %4 = vector.broadcast %3 : vector<1x128xf32> to vector<16x128xf32>
    %5 = arith.addf %2, %4 : vector<16x128xf32>
    %c0_5 = arith.constant 0 : index
    %c0_6 = arith.constant 0 : index
    %6 = vector.load %arg4[%c0_5, %c0_6] : memref<16x128xf32, #tpu.memory_space<vmem>>, vector<16x128xf32>
    tpu.vector_store %arg4[%c0_5, %c0_6], %5 {strides = array<i32>} : memref<16x128xf32, #tpu.memory_space<vmem>>, vector<16x128xf32>,
    return
  }
  func.func @transform_0(%arg0: i32) -> (i32, i32) {
    %c0_i32 = arith.constant 0 : i32
    %c0_i32_0 = arith.constant 0 : i32
    return %arg0, %c0_i32 : i32, i32
  }
  func.func @transform_1(%arg0: i32) -> (i32, i32) {
    %c0_i32 = arith.constant 0 : i32
    %c0_i32_0 = arith.constant 0 : i32
    %c0_i32_1 = arith.constant 0 : i32
    return %c0_i32, %c0_i32_0 : i32, i32
  }
  func.func @transform_2(%arg0: i32) -> (i32, i32) {
    %c0_i32 = arith.constant 0 : i32
    %c0_i32_0 = arith.constant 0 : i32
    %c0_i32_1 = arith.constant 0 : i32
    return %c0_i32, %c0_i32_0 : i32, i32
  }
  func.func @transform_3(%arg0: i32) -> (i32, i32) {
    %c0_i32 = arith.constant 0 : i32
    %c0_i32_0 = arith.constant 0 : i32
    return %arg0, %c0_i32 : i32, i32
  }
}

</mosaic_0001>

<llo_original>
// kernel: tpu_custom_call.1
$region0: #{tpu_custom_call.1}
  #allocation0 [shape = 'u32[]', space=smem, size = 0x4, offset = 0x4, fixed_abs, tag = 'smem constant byte address 0x4 - core index']
  #allocation1 [shape = 'u32[144,128]{1,0:T(1,128)}', space=vmem, size = 0x12000, scoped, tag = 'internal scratch']
  %s0 = inlined_call_operand.hbm [shape: f32[16,128], index: 0, kind: input, shape index: {}]
  %s1 = inlined_call_operand.hbm [shape: f32[128,128], index: 1, kind: input, shape index: {}]
  %s2 = inlined_call_operand.vmem [shape: f32[1,128], index: 2, kind: input, shape index: {}]
  %s3 = inlined_call_operand.hbm [shape: f32[16,128], index: 3, kind: output, shape index: {}]
  %s4 = sld [smem:[#allocation0]]
  $region30: #{tpu_custom_call.1} parent=0
    _
  %s6 = ssub.s32 1, %s4
  %s7 = scalar_select 0, %s6, %s4
  $region1: #{tpu_custom_call.1} parent=0
    #allocation2 [shape = 'u8[8192]{0}', space=vmem, size = 0x2000, scoped, tag = 'input window, operand 0, single buffered']
    #allocation3 [shape = 's32[1]{0}', space=sflag, size = 0x4, scoped, tag = 'scoped memory for tpu_custom_call.1']
    #allocation4 [shape = 's32[1]{0}', space=sflag, size = 0x4, scoped, tag = 'scoped memory for tpu_custom_call.1']
    #allocation5 [shape = 'u8[65536]{0}', space=vmem, size = 0x10000, scoped, tag = 'input window, operand 1, single buffered']
    #allocation6 [shape = 's32[1]{0}', space=sflag, size = 0x4, scoped, tag = 'scoped memory for tpu_custom_call.1']
    #allocation7 [shape = 'u8[8192]{0}', space=vmem, size = 0x2000, scoped, tag = 'output window, operand 0, single buffered']
    %8 = vsyncpa [#allocation3], 0
    %9 = vsyncpa [#allocation6], 0
    %10 = vsyncpa [#allocation4], 0
    // Predicated region
    $region2: #{tpu_custom_call.1} parent=1 // pred_check
      _
    $region3: #{tpu_custom_call.1} parent=1 // pred_check_branch
      %12 = sbr.rel (0) target = $region5
    $region4: #{tpu_custom_call.1} parent=1 // pred_region
      %s14 = ssub.s32 256, 256
      %15 = vsyncadd [#allocation3], %s14
      %s16 = sshll.u32 [#allocation2], 4
      %s17 = int_to_ptr.vmem [resolvable:$true] %s16
      %22 = dma.hbm_to_vmem [thread:$0]  %s0, 256, %s17, [#allocation3], 128, 128, 8
    $region5: #{tpu_custom_call.1} parent=1 // pred_fallthru
      _
    // Predicated region
    $region6: #{tpu_custom_call.1} parent=1 // pred_check
      _
    $region7: #{tpu_custom_call.1} parent=1 // pred_check_branch
      %24 = sbr.rel (0) target = $region9
    $region8: #{tpu_custom_call.1} parent=1 // pred_region
      %s26 = ssub.s32 2048, 2048
      %27 = vsyncadd [#allocation6], %s26
      %s28 = sshll.u32 [#allocation5], 4
      %s29 = int_to_ptr.vmem [resolvable:$true] %s28
      %34 = dma.hbm_to_vmem [thread:$0]  %s1, 2048, %s29, [#allocation6], 128, 128, 8
    $region9: #{tpu_custom_call.1} parent=1 // pred_fallthru
      _
    // Predicated region
    $region10: #{tpu_custom_call.1} parent=1 // pred_check
      _
    $region11: #{tpu_custom_call.1} parent=1 // pred_check_branch
      %36 = sbr.rel (0) target = $region13
    $region12: #{tpu_custom_call.1} parent=1 // pred_region
      _
    $region13: #{tpu_custom_call.1} parent=1 // pred_fallthru
      _
    // Predicated region
    $region14: #{tpu_custom_call.1} parent=1 // pred_check
      _
    $region15: #{tpu_custom_call.1} parent=1 // pred_check_branch
      %38 = sbr.rel (0) target = $region17
    $region16: #{tpu_custom_call.1} parent=1 // pred_region
      %39 = dma.done [#allocation3], 256
    $region17: #{tpu_custom_call.1} parent=1 // pred_fallthru
      _
    // Predicated region
    $region18: #{tpu_custom_call.1} parent=1 // pred_check
      _
    $region19: #{tpu_custom_call.1} parent=1 // pred_check_branch
      %41 = sbr.rel (0) target = $region21
    $region20: #{tpu_custom_call.1} parent=1 // pred_region
      %42 = dma.done [#allocation6], 2048
    $region21: #{tpu_custom_call.1} parent=1 // pred_fallthru
      _
    %v43 = vld [vmem:[#allocation2] sm:$0xff]
    %v44 = vld [vmem:[#allocation2 + $0x8] sm:$0xff]
    %v45 = vld [vmem:[#allocation5] sm:$0xff]
    %v46 = vld [vmem:[#allocation5 + $0x8] sm:$0xff]
    %v47 = vld [vmem:[#allocation5 + $0x10] sm:$0xff]
    %v48 = vld [vmem:[#allocation5 + $0x18] sm:$0xff]
    %v49 = vld [vmem:[#allocation5 + $0x20] sm:$0xff]
    %v50 = vld [vmem:[#allocation5 + $0x28] sm:$0xff]
    %v51 = vld [vmem:[#allocation5 + $0x30] sm:$0xff]
    %v52 = vld [vmem:[#allocation5 + $0x38] sm:$0xff]
    %v53 = vld [vmem:[#allocation5 + $0x40] sm:$0xff]
    %v54 = vld [vmem:[#allocation5 + $0x48] sm:$0xff]
    %v55 = vld [vmem:[#allocation5 + $0x50] sm:$0xff]
    %v56 = vld [vmem:[#allocation5 + $0x58] sm:$0xff]
    %v57 = vld [vmem:[#allocation5 + $0x60] sm:$0xff]
    %v58 = vld [vmem:[#allocation5 + $0x68] sm:$0xff]
    %v59 = vld [vmem:[#allocation5 + $0x70] sm:$0xff]
    %v60 = vld [vmem:[#allocation5 + $0x78] sm:$0xff]
    %v61 = vld [vmem:[%s2] sm:$0x1]
    %v63 = vlaneseq
    %v64 = vshrl.u32 %v63, 7
    %v65 = vsub.s32 0, %v64
    %v66 = vrot.slane %v61, %v65
    %68 = vmatprep.subr.mxu0 0.0
    %69 = vmatpush1.msra.mxu0 %v60
    %70 = vmatprep.subr.mxu0 0.0
    %71 = vmatpush1.msra.mxu0 %v59
    %72 = vmatprep.subr.mxu0 0.0
    %73 = vmatpush1.msra.mxu0 %v58
    %74 = vmatprep.subr.mxu0 0.0
    %75 = vmatpush1.msra.mxu0 %v57
    %76 = vmatprep.subr.mxu0 0.0
    %77 = vmatpush1.msra.mxu0 %v56
    %78 = vmatprep.subr.mxu0 0.0
    %79 = vmatpush1.msra.mxu0 %v55
    %80 = vmatprep.subr.mxu0 0.0
    %81 = vmatpush1.msra.mxu0 %v54
    %82 = vmatprep.subr.mxu0 0.0
    %83 = vmatpush1.msra.mxu0 %v53
    %84 = vmatprep.subr.mxu0 0.0
    %85 = vmatpush1.msra.mxu0 %v52
    %86 = vmatprep.subr.mxu0 0.0
    %87 = vmatpush1.msra.mxu0 %v51
    %88 = vmatprep.subr.mxu0 0.0
    %89 = vmatpush1.msra.mxu0 %v50
    %90 = vmatprep.subr.mxu0 0.0
    %91 = vmatpush1.msra.mxu0 %v49
    %92 = vmatprep.subr.mxu0 0.0
    %93 = vmatpush1.msra.mxu0 %v48
    %94 = vmatprep.subr.mxu0 0.0
    %95 = vmatpush1.msra.mxu0 %v47
    %96 = vmatprep.subr.mxu0 0.0
    %97 = vmatpush1.msra.mxu0 %v46
    %98 = vmatprep.subr.mxu0 0.0
    %99 = vmatpush1.msra.mxu0 %v45
    %100 = vmatprep.subr.mxu0 0.0
    %101 = vmatpush2.msra.mxu0 0.0
    %102 = vmatprep.subr.mxu0 0.0
    %103 = vmatpush2.msra.mxu0 0.0
    %104 = vmatprep.subr.mxu0 0.0
    %105 = vmatpush2.msra.mxu0 0.0
    %106 = vmatprep.subr.mxu0 0.0
    %107 = vmatpush2.msra.mxu0 0.0
    %108 = vmatprep.subr.mxu0 0.0
    %109 = vmatpush2.msra.mxu0 0.0
    %110 = vmatprep.subr.mxu0 0.0
    %111 = vmatpush2.msra.mxu0 0.0
    %112 = vmatprep.subr.mxu0 0.0
    %113 = vmatpush2.msra.mxu0 0.0
    %114 = vmatprep.subr.mxu0 0.0
    %115 = vmatpush2.msra.mxu0 0.0
    %116 = vmatprep.subr.mxu0 0.0
    %117 = vmatpush2.msra.mxu0 0.0
    %118 = vmatprep.subr.mxu0 0.0
    %119 = vmatpush2.msra.mxu0 0.0
    %120 = vmatprep.subr.mxu0 0.0
    %121 = vmatpush2.msra.mxu0 0.0
    %122 = vmatprep.subr.mxu0 0.0
    %123 = vmatpush2.msra.mxu0 0.0
    %124 = vmatprep.subr.mxu0 0.0
    %125 = vmatpush2.msra.mxu0 0.0
    %126 = vmatprep.subr.mxu0 0.0
    %127 = vmatpush2.msra.mxu0 0.0
    %128 = vmatprep.subr.mxu0 0.0
    %129 = vmatpush2.msra.mxu0 0.0
    %130 = vmatprep.subr.mxu0 0.0
    %131 = vmatpush2.msra.mxu0 0.0
    %132 = vmatprep.mubr.f32.mxu0 0.0
    %133 = vmatmul.mubr.f32.gmra.mxu0 %v43
    %v134 = vpop.f32.mrf.mxu0
    %v135 = vadd.f32 %v66, %v134
    %v136 = vpop.f32.mrf.mxu0
    %137 = vmatprep.mubr.f32.mxu0 0.0
    %138 = vmatmul.mubr.f32.gmra.mxu0 %v44
    %v139 = vpop.f32.mrf.mxu0
    %v140 = vadd.f32 %v66, %v139
    %v141 = vpop.f32.mrf.mxu0
    %142 = vdwg.mxu0
    %143 = vst [vmem:[#allocation7] sm:$0xff] %v135
    %144 = vst [vmem:[#allocation7 + $0x8] sm:$0xff] %v140
    // Predicated region
    $region22: #{tpu_custom_call.1} parent=1 // pred_check
      _
    $region23: #{tpu_custom_call.1} parent=1 // pred_check_branch
      %146 = sbr.rel (0) target = $region25
    $region24: #{tpu_custom_call.1} parent=1 // pred_region
      %s148 = ssub.s32 256, 256
      %149 = vsyncadd [#allocation4], %s148
      %s150 = sshll.u32 [#allocation7], 4
      %s151 = int_to_ptr.vmem [resolvable:$true] %s150
      %156 = dma.vmem_to_hbm [thread:$0]  %s151, 256, %s3, [#allocation4], 128, 128, 8
    $region25: #{tpu_custom_call.1} parent=1 // pred_fallthru
      _
    // Predicated region
    $region26: #{tpu_custom_call.1} parent=1 // pred_check
      _
    $region27: #{tpu_custom_call.1} parent=1 // pred_check_branch
      %158 = sbr.rel (0) target = $region29
    $region28: #{tpu_custom_call.1} parent=1 // pred_region
      %159 = dma.done [#allocation4], 256
    $region29: #{tpu_custom_call.1} parent=1 // pred_fallthru
      _
    %160 = vsyncpa [#allocation3], 1
    %161 = vsyncpa [#allocation6], 1
    %162 = vsyncpa [#allocation4], 1

</llo_original>
